<compile_context>
chip_gen: v6e
topology: v6e:2x2x1
jax: 0.10.0
libtpu: 0.0.40
codegen_flags: <defaults>
</compile_context>

<pallas_src>
import jax
import jax.numpy as jnp
from jax.experimental import pallas as pl
from jax.experimental.pallas import tpu as pltpu


def _round_up(v, m):
    return ((v + m - 1) // m) * m


def _device_kind():
    try:
        return jax.devices()[0].device_kind.lower()
    except Exception:  # pragma: no cover - defensive
        return ""


def _default_num_shards():
    # v7x has 2 TensorCores per chip; v5e/v6e have 1 (a shard axis there only
    # serializes: extra accumulator writeback + iota re-init for zero benefit).
    return 2 if "v7" in _device_kind() else 1


def _vmem_cap_bytes():
    # Physical VMEM: v7x = 64 MiB per TC, v5e/v6e = 128 MiB. Leave headroom.
    return (48 << 20) if "v7" in _device_kind() else (100 << 20)


def _vmem_usage_bytes(tile_n, d, g, x_itemsize):
    x_buf = 2 * tile_n * d * x_itemsize       # double-buffered x tiles
    b_buf = 2 * tile_n * 4                    # double-buffered (1, tile_n) ids
    iota = g * tile_n * 4                     # cached iota scratch
    onehot = g * tile_n * max(x_itemsize, 4)  # one-hot temporary
    acc = 2 * g * d * 4                       # resident f32 accumulator (+ writeback)
    return x_buf + b_buf + iota + onehot + acc


def _segment_sum_kernel(batch_ref, x_ref, graph_ref, iota_ref):
    # batch_ref: (1, TN)  int32  -- lane-oriented graph id per node in this tile
    # x_ref:     (TN, D)  x.dtype-- node features tile
    # graph_ref: (G, D)   f32    -- per-shard resident accumulator (arbitrary axis)
    # iota_ref:  (G, TN)  int32  -- cached graph-id iota (VMEM scratch)
    i = pl.program_id(1)  # inner (reduction) axis over node tiles
    G, TN = iota_ref.shape

    @pl.when(i == 0)
    def _():
        graph_ref[...] = jnp.zeros_like(graph_ref)
        iota_ref[...] = jax.lax.broadcasted_iota(jnp.int32, (G, TN), 0)

    seg = batch_ref[...]                                    # (1, TN) int32
    # Exact 0/1 scatter matrix in x's dtype (bf16 one-hot is exact; keeps the
    # MXU at its fast rate and halves onehot vreg footprint for bf16 inputs).
    onehot = (iota_ref[...] == seg).astype(x_ref.dtype)     # (G, TN)

    # segment-sum as a small MXU matmul: (G, TN) @ (TN, D) -> (G, D), f32 acc.
    graph_ref[...] += jnp.dot(onehot, x_ref[...], preferred_element_type=jnp.float32)


def identity_model_forward(x, batch, num_graphs, *, tile_n=None, num_shards=None):
    """IdentityModel forward.

    x:     [N, D] float node features (f32 or bf16)
    batch: [N]    int graph assignment per node
    Returns (node_embedding [N, D], graph_embedding [num_graphs, D]).
    """
    N, D = x.shape
    G = int(num_graphs)
    batch = batch.astype(jnp.int32)
    itemsize = jnp.dtype(x.dtype).itemsize

    # ---- tile sizing: target ~2 MiB x tiles, bounded by N to limit padding ----
    if tile_n is None:
        target = (2 << 20) // max(D * itemsize, 1)
        tile_n = max(128, min(4096, _round_up(target, 128)))
        tile_n = min(tile_n, _round_up(N, 128))
    assert tile_n % 128 == 0, "tile_n must be a multiple of 128 (lane width)"

    # ---- fit the footprint into the per-generation VMEM cap ----
    cap = _vmem_cap_bytes()
    while tile_n > 128 and _vmem_usage_bytes(tile_n, D, G, itemsize) > cap // 2:
        tile_n = max(128, _round_up(tile_n // 2, 128))
    usage = _vmem_usage_bytes(tile_n, D, G, itemsize)
    vmem_limit = int(min(cap, max(32 << 20, 4 * usage)))

    # ---- shard axis: only when the chip actually has >1 TensorCore ----
    if num_shards is None:
        num_shards = _default_num_shards()
    if _round_up(N, tile_n) // tile_n < num_shards:
        num_shards = 1

    chunk = tile_n * num_shards
    n_pad = _round_up(N, chunk)
    if n_pad != N:
        x_in = jnp.pad(x, ((0, n_pad - N), (0, 0)))
        # Pad ids with num_graphs (out of range) so padded rows match no graph.
        batch_in = jnp.pad(batch, (0, n_pad - N), constant_values=G)
    else:
        x_in = x
        batch_in = batch
    batch_row = batch_in.reshape(1, n_pad)  # lane-oriented ids

    steps_per_shard = n_pad // chunk

    partials = pl.pallas_call(
        _segment_sum_kernel,
        out_shape=jax.ShapeDtypeStruct((num_shards, G, D), jnp.float32),
        grid_spec=pltpu.PrefetchScalarGridSpec(
            num_scalar_prefetch=0,
            grid=(num_shards, steps_per_shard),
            in_specs=[
                # batch ids, lane-dense (1, tile_n) tile
                pl.BlockSpec((1, tile_n), lambda c, i: (0, c * steps_per_shard + i)),
                # node features tile (tile_n, D)
                pl.BlockSpec((tile_n, D), lambda c, i: (c * steps_per_shard + i, 0)),
            ],
            # per-shard resident accumulator: same block across the inner axis
            out_specs=pl.BlockSpec((None, G, D), lambda c, i: (c, 0, 0)),
            scratch_shapes=[pltpu.VMEM((G, tile_n), jnp.int32)],
        ),
        compiler_params=pltpu.CompilerParams(
            # Outer axis shards node tiles across TensorCores on v7x (num_shards=2);
            # on single-TC chips num_shards==1 so it is a trivial size-1 axis.
            # Inner axis is the reduction into the resident accumulator.
            dimension_semantics=("parallel", "arbitrary"),
            vmem_limit_bytes=vmem_limit,
        ),
    )(batch_row, x_in)

    graph_emb = partials.sum(axis=0).astype(x.dtype)
    node_emb = x  # identity pass-through; no HBM round-trip through the kernel
    return node_emb, graph_emb


if __name__ == "__main__":
    key = jax.random.PRNGKey(0)
    kx, kb = jax.random.split(key)

    N, D, G = 16, 32, 4  # 16 nodes, 32 features, 4 graphs in the batch
    x = jax.random.normal(kx, (N, D), dtype=jnp.float32)
    batch = jnp.sort(jax.random.randint(kb, (N,), 0, G, dtype=jnp.int32))

    node_emb, graph_emb = identity_model_forward(x, batch, G)
    jax.block_until_ready((node_emb, graph_emb))

    # reference check
    ref_node = x
    ref_graph = jax.ops.segment_sum(x, batch, num_segments=G)
    assert jnp.allclose(node_emb, ref_node), "node_embedding mismatch"
    assert jnp.allclose(graph_emb, ref_graph, atol=1e-5), "graph_embedding mismatch"

    print("KERNEL_OK")
</pallas_src>

<mosaic_0001>
module attributes {stable_mosaic.version = 11 : i64} {
  func.func @_segment_sum_kernel(%arg0: i32, %arg1: i32, %arg2: memref<1x128xi32, #tpu.memory_space<vmem>>, %arg3: memref<128x32xf32, #tpu.memory_space<vmem>>, %arg4: memref<1x4x32xf32, #tpu.memory_space<vmem>>, %arg5: memref<4x128xi32, #tpu.memory_space<vmem>>) attributes {dimension_semantics = [#tpu.dimension_semantics<parallel>, #tpu.dimension_semantics<arbitrary>], iteration_bounds = array<i64: 1, 1>, scalar_prefetch = 0 : i64, scratch_operands = 1 : i64, tpu.core_type = #tpu.core_type<tc>, window_params = [{transform_indices = @transform_0, window_bounds = array<i64: 1, 128>}, {transform_indices = @transform_1, window_bounds = array<i64: 128, 32>}, {transform_indices = @transform_2, window_bounds = array<i64: 1, 4, 32>}]} {
    %c0_i32 = arith.constant 0 : i32
    %0 = arith.cmpi eq, %arg1, %c0_i32 : i32
    %1 = arith.extui %0 : i1 to i32
    %c0_i32_0 = arith.constant 0 : i32
    %2 = arith.cmpi ne, %1, %c0_i32_0 : i32
    scf.if %2 {
      %cst_12 = arith.constant 0.000000e+00 : f32
      %17 = vector.broadcast %cst_12 : f32 to vector<4x32xf32>
      %c0_13 = arith.constant 0 : index
      %c0_14 = arith.constant 0 : index
      %c0_15 = arith.constant 0 : index
      %18 = vector.load %arg4[%c0_13, %c0_14, %c0_15] : memref<1x4x32xf32, #tpu.memory_space<vmem>>, vector<1x4x32xf32>
      %19 = vector.shape_cast %18 : vector<1x4x32xf32> to vector<4x32xf32>
      %20 = vector.shape_cast %17 : vector<4x32xf32> to vector<1x4x32xf32>
      tpu.vector_store %arg4[%c0_13, %c0_14, %c0_15], %20 {strides = array<i32>} : memref<1x4x32xf32, #tpu.memory_space<vmem>>, vector<1x4x32xf32>,
      %21 = tpu.iota {dimensions = array<i32: 0>} : vector<4x128xi32>
      %c0_16 = arith.constant 0 : index
      %c0_17 = arith.constant 0 : index
      %22 = vector.load %arg5[%c0_16, %c0_17] : memref<4x128xi32, #tpu.memory_space<vmem>>, vector<4x128xi32>
      tpu.vector_store %arg5[%c0_16, %c0_17], %21 {strides = array<i32>} : memref<4x128xi32, #tpu.memory_space<vmem>>, vector<4x128xi32>,
    } else {
    }
    %c0 = arith.constant 0 : index
    %c0_1 = arith.constant 0 : index
    %3 = vector.load %arg2[%c0, %c0_1] : memref<1x128xi32, #tpu.memory_space<vmem>>, vector<1x128xi32>
    %c0_2 = arith.constant 0 : index
    %c0_3 = arith.constant 0 : index
    %4 = vector.load %arg5[%c0_2, %c0_3] : memref<4x128xi32, #tpu.memory_space<vmem>>, vector<4x128xi32>
    %5 = vector.broadcast %3 : vector<1x128xi32> to vector<4x128xi32>
    %6 = arith.cmpi eq, %4, %5 : vector<4x128xi32>
    %7 = arith.extui %6 : vector<4x128xi1> to vector<4x128xi32>
    %8 = arith.sitofp %7 : vector<4x128xi32> to vector<4x128xf32>
    %c0_4 = arith.constant 0 : index
    %c0_5 = arith.constant 0 : index
    %c0_6 = arith.constant 0 : index
    %9 = vector.load %arg4[%c0_4, %c0_5, %c0_6] : memref<1x4x32xf32, #tpu.memory_space<vmem>>, vector<1x4x32xf32>
    %10 = vector.shape_cast %9 : vector<1x4x32xf32> to vector<4x32xf32>
    %c0_7 = arith.constant 0 : index
    %c0_8 = arith.constant 0 : index
    %11 = vector.load %arg3[%c0_7, %c0_8] : memref<128x32xf32, #tpu.memory_space<vmem>>, vector<128x32xf32>
    %cst = arith.constant dense<0.000000e+00> : vector<4x32xf32>
    %12 = tpu.matmul %8, %11, %cst {dimension_numbers = #tpu.dot_dimension_numbers<[1], [0], [0], [1], [0, 0, 1, 1], [], []>} : vector<4x128xf32>, vector<128x32xf32>, vector<4x32xf32> -> vector<4x32xf32>
    %13 = arith.addf %10, %12 : vector<4x32xf32>
    %c0_9 = arith.constant 0 : index
    %c0_10 = arith.constant 0 : index
    %c0_11 = arith.constant 0 : index
    %14 = vector.load %arg4[%c0_9, %c0_10, %c0_11] : memref<1x4x32xf32, #tpu.memory_space<vmem>>, vector<1x4x32xf32>
    %15 = vector.shape_cast %14 : vector<1x4x32xf32> to vector<4x32xf32>
    %16 = vector.shape_cast %13 : vector<4x32xf32> to vector<1x4x32xf32>
    tpu.vector_store %arg4[%c0_9, %c0_10, %c0_11], %16 {strides = array<i32>} : memref<1x4x32xf32, #tpu.memory_space<vmem>>, vector<1x4x32xf32>,
    return
  }
  func.func @transform_0(%arg0: i32, %arg1: i32) -> (i32, i32) {
    %c1_i32 = arith.constant 1 : i32
    %0 = arith.muli %arg0, %c1_i32 : i32
    %1 = arith.addi %0, %arg1 : i32
    %c0_i32 = arith.constant 0 : i32
    %c0_i32_0 = arith.constant 0 : i32
    return %c0_i32, %1 : i32, i32
  }
  func.func @transform_1(%arg0: i32, %arg1: i32) -> (i32, i32) {
    %c1_i32 = arith.constant 1 : i32
    %0 = arith.muli %arg0, %c1_i32 : i32
    %1 = arith.addi %0, %arg1 : i32
    %c0_i32 = arith.constant 0 : i32
    %c0_i32_0 = arith.constant 0 : i32
    return %1, %c0_i32 : i32, i32
  }
  func.func @transform_2(%arg0: i32, %arg1: i32) -> (i32, i32, i32) {
    %c0_i32 = arith.constant 0 : i32
    %c0_i32_0 = arith.constant 0 : i32
    %c0_i32_1 = arith.constant 0 : i32
    return %arg0, %c0_i32, %c0_i32_0 : i32, i32, i32
  }
}

</mosaic_0001>

<llo_original>
// kernel: tpu_custom_call.1
$region0: #{tpu_custom_call.1}
  #allocation0 [shape = 'u32[]', space=smem, size = 0x4, offset = 0x4, fixed_abs, tag = 'smem constant byte address 0x4 - core index']
  #allocation1 [shape = 'u32[144,128]{1,0:T(1,128)}', space=vmem, size = 0x12000, scoped, tag = 'internal scratch']
  #allocation2 [shape = 's32[4,128]{1,0:T(4,128)}', space=vmem, size = 0x800, scoped, tag = 'scratch operand']
  %s0 = inlined_call_operand.vmem [shape: s32[1,128], index: 0, kind: input, shape index: {}]
  %s1 = inlined_call_operand.vmem [shape: f32[128,32], index: 1, kind: input, shape index: {}]
  %s2 = inlined_call_operand.hbm [shape: f32[1,4,32], index: 2, kind: output, shape index: {}]
  %s3 = sld [smem:[#allocation0]]
  $region22: #{tpu_custom_call.1} parent=0
    _
  %s5 = ssub.s32 1, %s3
  %s6 = scalar_select 0, %s5, %s3
  $region1: #{tpu_custom_call.1} parent=0
    #allocation3 [shape = 'u8[2048]{0}', space=vmem, size = 0x800, scoped, tag = 'output window, operand 0, single buffered']
    #allocation4 [shape = 's32[1]{0}', space=sflag, size = 0x4, scoped, tag = 'scoped memory for tpu_custom_call.1']
    %7 = vsyncpa [#allocation4], 0
    // Predicated region
    $region2: #{tpu_custom_call.1} parent=1 // pred_check
      _
    $region3: #{tpu_custom_call.1} parent=1 // pred_check_branch
      %9 = sbr.rel (0) target = $region5
    $region4: #{tpu_custom_call.1} parent=1 // pred_region
      %s10 = sadd.s32 0, 0
      %p11 = scmp.lt.s32.totalorder %s10, 0
      %s12 = scalar_select %p11, %s10, 0
      %s13 = scalar_lea.vmem %s0, %s12
      %s14 = sadd.s32 0, 0
    $region5: #{tpu_custom_call.1} parent=1 // pred_fallthru
      _
    // Predicated region
    $region6: #{tpu_custom_call.1} parent=1 // pred_check
      _
    $region7: #{tpu_custom_call.1} parent=1 // pred_check_branch
      %16 = sbr.rel (0) target = $region9
    $region8: #{tpu_custom_call.1} parent=1 // pred_region
      %s17 = sadd.s32 0, 0
      %s18 = smul.u32 16, %s17
      %p19 = scmp.lt.s32.totalorder %s18, 15
      %s20 = scalar_select %p19, %s18, 15
      %s21 = smul.addr %s20, 8
      %s22 = scalar_lea.vmem %s1, %s21
      %s23 = sadd.s32 0, 0
      %s24 = smul.u32 16, %s23
    $region9: #{tpu_custom_call.1} parent=1 // pred_fallthru
      _
    %s25 = sadd.s32 0, 0
    %p26 = scmp.lt.s32.totalorder %s25, 0
    %s27 = scalar_select %p26, %s25, 0
    %s28 = scalar_lea.vmem %s0, %s27
    %s29 = sadd.s32 0, 0
    %s30 = smul.u32 16, %s29
    %p31 = scmp.lt.s32.totalorder %s30, 15
    %s32 = scalar_select %p31, %s30, 15
    %s33 = smul.addr %s32, 8
    %s34 = scalar_lea.vmem %s1, %s33
    %s35 = sadd.s32 0, 0
    %p36 = scmp.lt.s32.totalorder %s35, 0
    %s37 = scalar_select %p36, %s35, 0
    %s38 = scalar_lea.vmem %s0, %s37
    %s39 = sadd.s32 0, 0
    %s40 = sadd.s32 0, 0
    %s41 = smul.u32 16, %s40
    %p42 = scmp.lt.s32.totalorder %s41, 15
    %s43 = scalar_select %p42, %s41, 15
    %s44 = smul.addr %s43, 8
    %s45 = scalar_lea.vmem %s1, %s44
    %s46 = sadd.s32 0, 0
    %s47 = smul.u32 16, %s46
    %p48 = scmp.eq.s32.totalorder 0, 0
    // Predicated region
    $region10: #{tpu_custom_call.1} parent=1 // pred_check
      %p49 = pneg %p48
    $region11: #{tpu_custom_call.1} parent=1 // pred_check_branch
      %51 = sbr.rel (%p49) target = $region13
    $region12: #{tpu_custom_call.1} parent=1 // pred_region
      %vm52 = vcmask 257024
      %53 = vst.msk [vmem:[#allocation3] sm:$0xf] %vm52, 0.0
      %v54 = vlaneseq
      %v55 = vshrl.u32 %v54, 7
      %56 = vst [vmem:[#allocation2] sm:$0xf] %v55
    $region13: #{tpu_custom_call.1} parent=1 // pred_fallthru
      _
    %v57 = vld [vmem:[%s38] sm:$0x1]
    %v58 = vld [vmem:[#allocation2] sm:$0xf]
    %v59 = vlaneseq
    %v60 = vshrl.u32 %v59, 7
    %v61 = vsub.s32 0, %v60
    %v62 = vrot.slane %v57, %v61
    %vm63 = vcmp.eq.s32.totalorder %v58, %v62
    %v64 = vsel %vm63, 1, 0
    %v65 = vcvt.s32.f32 %v64
    %v66 = vld [vmem:[#allocation3] sm:$0xf]
    %v67 = vld [vmem:[%s45] sm:$0xff]
    %v68 = vld [vmem:[%s45 + $0x8] sm:$0xff]
    %v69 = vld [vmem:[%s45 + $0x10] sm:$0xff]
    %v70 = vld [vmem:[%s45 + $0x18] sm:$0xff]
    %v71 = vld [vmem:[%s45 + $0x20] sm:$0xff]
    %v72 = vld [vmem:[%s45 + $0x28] sm:$0xff]
    %v73 = vld [vmem:[%s45 + $0x30] sm:$0xff]
    %v74 = vld [vmem:[%s45 + $0x38] sm:$0xff]
    %v75 = vld [vmem:[%s45 + $0x40] sm:$0xff]
    %v76 = vld [vmem:[%s45 + $0x48] sm:$0xff]
    %v77 = vld [vmem:[%s45 + $0x50] sm:$0xff]
    %v78 = vld [vmem:[%s45 + $0x58] sm:$0xff]
    %v79 = vld [vmem:[%s45 + $0x60] sm:$0xff]
    %v80 = vld [vmem:[%s45 + $0x68] sm:$0xff]
    %v81 = vld [vmem:[%s45 + $0x70] sm:$0xff]
    %v82 = vld [vmem:[%s45 + $0x78] sm:$0xff]
    %83 = vmatprep.subr.mxu0 0.0
    %84 = vmatpush1.msra.mxu0 %v82
    %85 = vmatprep.subr.mxu0 0.0
    %86 = vmatpush1.msra.mxu0 %v81
    %87 = vmatprep.subr.mxu0 0.0
    %88 = vmatpush1.msra.mxu0 %v80
    %89 = vmatprep.subr.mxu0 0.0
    %90 = vmatpush1.msra.mxu0 %v79
    %91 = vmatprep.subr.mxu0 0.0
    %92 = vmatpush1.msra.mxu0 %v78
    %93 = vmatprep.subr.mxu0 0.0
    %94 = vmatpush1.msra.mxu0 %v77
    %95 = vmatprep.subr.mxu0 0.0
    %96 = vmatpush1.msra.mxu0 %v76
    %97 = vmatprep.subr.mxu0 0.0
    %98 = vmatpush1.msra.mxu0 %v75
    %99 = vmatprep.subr.mxu0 0.0
    %100 = vmatpush1.msra.mxu0 %v74
    %101 = vmatprep.subr.mxu0 0.0
    %102 = vmatpush1.msra.mxu0 %v73
    %103 = vmatprep.subr.mxu0 0.0
    %104 = vmatpush1.msra.mxu0 %v72
    %105 = vmatprep.subr.mxu0 0.0
    %106 = vmatpush1.msra.mxu0 %v71
    %107 = vmatprep.subr.mxu0 0.0
    %108 = vmatpush1.msra.mxu0 %v70
    %109 = vmatprep.subr.mxu0 0.0
    %110 = vmatpush1.msra.mxu0 %v69
    %111 = vmatprep.subr.mxu0 0.0
    %112 = vmatpush1.msra.mxu0 %v68
    %113 = vmatprep.subr.mxu0 0.0
    %114 = vmatpush1.msra.mxu0 %v67
    %115 = vmatprep.subr.mxu0 0.0
    %116 = vmatpush2.msra.mxu0 0.0
    %117 = vmatprep.subr.mxu0 0.0
    %118 = vmatpush2.msra.mxu0 0.0
    %119 = vmatprep.subr.mxu0 0.0
    %120 = vmatpush2.msra.mxu0 0.0
    %121 = vmatprep.subr.mxu0 0.0
    %122 = vmatpush2.msra.mxu0 0.0
    %123 = vmatprep.subr.mxu0 0.0
    %124 = vmatpush2.msra.mxu0 0.0
    %125 = vmatprep.subr.mxu0 0.0
    %126 = vmatpush2.msra.mxu0 0.0
    %127 = vmatprep.subr.mxu0 0.0
    %128 = vmatpush2.msra.mxu0 0.0
    %129 = vmatprep.subr.mxu0 0.0
    %130 = vmatpush2.msra.mxu0 0.0
    %131 = vmatprep.subr.mxu0 0.0
    %132 = vmatpush2.msra.mxu0 0.0
    %133 = vmatprep.subr.mxu0 0.0
    %134 = vmatpush2.msra.mxu0 0.0
    %135 = vmatprep.subr.mxu0 0.0
    %136 = vmatpush2.msra.mxu0 0.0
    %137 = vmatprep.subr.mxu0 0.0
    %138 = vmatpush2.msra.mxu0 0.0
    %139 = vmatprep.subr.mxu0 0.0
    %140 = vmatpush2.msra.mxu0 0.0
    %141 = vmatprep.subr.mxu0 0.0
    %142 = vmatpush2.msra.mxu0 0.0
    %143 = vmatprep.subr.mxu0 0.0
    %144 = vmatpush2.msra.mxu0 0.0
    %145 = vmatprep.subr.mxu0 0.0
    %146 = vmatpush2.msra.mxu0 0.0
    %147 = vmatprep.mubr.f32.mxu0 0.0
    %148 = vmatmul.mubr.f32.gmra.mxu0 %v65
    %v149 = vpop.f32.mrf.mxu0
    %v150 = vadd.f32 0.0, %v149
    %v151 = vpop.f32.mrf.mxu0
    %152 = vdwg.mxu0
    %v153 = vadd.f32 %v66, %v150
    %vm154 = vcmask 257024
    %155 = vst.msk [vmem:[#allocation3] sm:$0xf] %vm154, %v153
    // Predicated region
    $region14: #{tpu_custom_call.1} parent=1 // pred_check
      _
    $region15: #{tpu_custom_call.1} parent=1 // pred_check_branch
      %157 = sbr.rel (0) target = $region17
    $region16: #{tpu_custom_call.1} parent=1 // pred_region
      %s159 = ssub.s32 64, 64
      %160 = vsyncadd [#allocation4], %s159
      %s162 = sshll.u32 [#allocation3], 4
      %s163 = int_to_ptr.vmem [resolvable:$true] %s162
      %165 = dma.vmem_to_hbm [thread:$0]  %s163, 64, %s2, [#allocation4]
    $region17: #{tpu_custom_call.1} parent=1 // pred_fallthru
      _
    // Predicated region
    $region18: #{tpu_custom_call.1} parent=1 // pred_check
      _
    $region19: #{tpu_custom_call.1} parent=1 // pred_check_branch
      %167 = sbr.rel (0) target = $region21
    $region20: #{tpu_custom_call.1} parent=1 // pred_region
      %168 = dma.done [#allocation4], 64
    $region21: #{tpu_custom_call.1} parent=1 // pred_fallthru
      _
    %169 = vsyncpa [#allocation4], 1

</llo_original>
